<compile_context>
chip_gen: v7x
topology: tpu7x:2x2x1
jax: 0.10.0
libtpu: 0.0.40
codegen_flags: <defaults>
</compile_context>

<pallas_src>
import jax
import jax.numpy as jnp
from jax.experimental import pallas as pl
from jax.experimental.pallas import tpu as pltpu

F_IN = 19
F_HID = 8
F_OUT = 2

# Batch-tile rows: multiple of 128 (lane-dense [2, tm] output block rule).
# Lane padding makes an x tile cost tm*512 B of VMEM, so double-buffered x at
# tm=24576 is ~24 MiB; the lane-dense output adds only tm*32 B per buffer.
TM_TARGET = 24576
VMEM_LIMIT_BYTES = 44 * 1024 * 1024

_HIGHEST = jax.lax.Precision.HIGHEST


def lrnet_kernel(x_ref, w_ref, b_ref, o_ref):
    # y^T = W_eff^T @ x^T, produced directly in lane-dense [2, tm] layout via an
    # rhs-transposed dot (same dimension_numbers as the q @ k^T flash pattern).
    y = jax.lax.dot_general(
        w_ref[...], x_ref[...],
        dimension_numbers=(((1,), (1,)), ((), ())),
        preferred_element_type=jnp.float32,
        precision=_HIGHEST,
    )
    y = y + b_ref[...]  # [2, 1] bias broadcast along lanes
    # Exact, numerically stable sigmoid: exp on the EUP, select/divide on the
    # VPU -- all hidden under the HBM DMA in this memory-bound kernel.
    z = jnp.exp(-jnp.abs(y))
    o_ref[...] = (jnp.where(y >= 0, 1.0, z) / (1.0 + z)).astype(o_ref.dtype)


def _round_up(n, m):
    return ((n + m - 1) // m) * m


def lrnet_forward(x, w1_t, b1, w2_t, b2):
    """x: [B, 19] f32; w1_t: [19, 8]; b1: [1, 8]; w2_t: [8, 2]; b2: [1, 2]."""
    B = x.shape[0]

    # Fold the two bias-linears (no nonlinearity between them) once, at full
    # f32 precision, pre-transposed for the lane-dense kernel layout.
    w_eff_t = jnp.dot(w1_t, w2_t, precision=_HIGHEST).T            # [2, 19]
    b_eff_t = (jnp.dot(b1, w2_t, precision=_HIGHEST) + b2).T       # [2, 1]

    # Batch tile: single full-extent block for small B; otherwise a multiple of
    # 128 with at least 2 grid steps (so both v7x TensorCores get work), capped
    # at TM_TARGET.  Partial trailing blocks are clipped by Pallas.
    if B <= 128:
        tm = B
    else:
        tm = min(TM_TARGET, _round_up(pl.cdiv(B, 2), 128))
    grid = (pl.cdiv(B, tm),)

    out_t = pl.pallas_call(
        lrnet_kernel,
        out_shape=jax.ShapeDtypeStruct((F_OUT, B), jnp.float32),
        grid=grid,
        in_specs=[
            pl.BlockSpec((tm, F_IN), lambda i: (i, 0)),      # x: tiled over batch
            pl.BlockSpec((F_OUT, F_IN), lambda i: (0, 0)),   # W_eff^T: resident
            pl.BlockSpec((F_OUT, 1), lambda i: (0, 0)),      # b_eff^T: resident
        ],
        out_specs=pl.BlockSpec((F_OUT, tm), lambda i: (0, i)),  # lane-dense [2, B]
        compiler_params=pltpu.CompilerParams(
            dimension_semantics=("parallel",),   # shard batch tiles across TCs
            vmem_limit_bytes=VMEM_LIMIT_BYTES,
        ),
    )(x, w_eff_t, b_eff_t)

    # Callers expect the module's [B, 2]; transposing back costs only 16 B/row.
    return out_t.T


lrnet_forward = jax.jit(lrnet_forward)


def init_params(key):
    """Deterministic init mimicking nn.Linear's uniform(-1/sqrt(fan_in), +)."""
    k1, k2, k3, k4 = jax.random.split(key, 4)
    bound1 = 1.0 / jnp.sqrt(float(F_IN))
    bound2 = 1.0 / jnp.sqrt(float(F_HID))
    # Weights stored already transposed: [in, out]
    w1_t = jax.random.uniform(k1, (F_IN, F_HID), jnp.float32, -bound1, bound1)
    b1 = jax.random.uniform(k2, (1, F_HID), jnp.float32, -bound1, bound1)
    w2_t = jax.random.uniform(k3, (F_HID, F_OUT), jnp.float32, -bound2, bound2)
    b2 = jax.random.uniform(k4, (1, F_OUT), jnp.float32, -bound2, bound2)
    return w1_t, b1, w2_t, b2


def reference_forward(x, w1_t, b1, w2_t, b2):
    h = jnp.dot(x, w1_t, precision=_HIGHEST) + b1
    y = jnp.dot(h, w2_t, precision=_HIGHEST) + b2
    return jax.nn.sigmoid(y)


if __name__ == "__main__":
    key = jax.random.PRNGKey(0)
    k_x, k_x2, k_p = jax.random.split(key, 3)
    w1_t, b1, w2_t, b2 = init_params(k_p)

    # Small batch: single full-extent block.
    B = 8
    x = jax.random.normal(k_x, (B, F_IN), dtype=jnp.float32)
    out = jax.block_until_ready(lrnet_forward(x, w1_t, b1, w2_t, b2))
    ref = reference_forward(x, w1_t, b1, w2_t, b2)
    assert out.shape == (B, F_OUT), out.shape
    assert jnp.max(jnp.abs(out - ref)) < 1e-4, "mismatch vs reference (small batch)"

    # Medium batch: exercises the tiled two-grid-step path (tm=384, last block
    # partial) with the lane-dense [2, B] output layout.
    B2 = 640
    x2 = jax.random.normal(k_x2, (B2, F_IN), dtype=jnp.float32)
    out2 = jax.block_until_ready(lrnet_forward(x2, w1_t, b1, w2_t, b2))
    ref2 = reference_forward(x2, w1_t, b1, w2_t, b2)
    assert out2.shape == (B2, F_OUT), out2.shape
    assert jnp.max(jnp.abs(out2 - ref2)) < 1e-4, "mismatch vs reference (tiled batch)"

    print("KERNEL_OK")
</pallas_src>

<mosaic_0001>
module attributes {stable_mosaic.version = 11 : i64} {
  func.func @lrnet_kernel(%arg0: i32, %arg1: memref<8x19xf32, #tpu.memory_space<vmem>>, %arg2: memref<2x19xf32, #tpu.memory_space<vmem>>, %arg3: memref<2x1xf32, #tpu.memory_space<vmem>>, %arg4: memref<2x8xf32, #tpu.memory_space<vmem>>) attributes {dimension_semantics = [#tpu.dimension_semantics<parallel>], iteration_bounds = array<i64: 1>, scalar_prefetch = 0 : i64, scratch_operands = 0 : i64, tpu.core_type = #tpu.core_type<tc>, window_params = [{transform_indices = @transform_0, window_bounds = array<i64: 8, 19>}, {pipeline_mode = #tpu.pipeline_mode<synchronous>, transform_indices = @transform_1, window_bounds = array<i64: 2, 19>}, {pipeline_mode = #tpu.pipeline_mode<synchronous>, transform_indices = @transform_2, window_bounds = array<i64: 2, 1>}, {transform_indices = @transform_3, window_bounds = array<i64: 2, 8>}]} {
    %c0 = arith.constant 0 : index
    %c0_0 = arith.constant 0 : index
    %0 = vector.load %arg2[%c0, %c0_0] : memref<2x19xf32, #tpu.memory_space<vmem>>, vector<2x19xf32>
    %c0_1 = arith.constant 0 : index
    %c0_2 = arith.constant 0 : index
    %1 = vector.load %arg1[%c0_1, %c0_2] : memref<8x19xf32, #tpu.memory_space<vmem>>, vector<8x19xf32>
    %cst = arith.constant dense<0.000000e+00> : vector<2x8xf32>
    %2 = tpu.matmul %0, %1, %cst {dimension_numbers = #tpu.dot_dimension_numbers<[1], [1], [0], [0], [0, 0, 1, 0], [], []>, precision = #tpu.contract_precision<fp32>} : vector<2x19xf32>, vector<8x19xf32>, vector<2x8xf32> -> vector<2x8xf32>
    %c0_3 = arith.constant 0 : index
    %c0_4 = arith.constant 0 : index
    %3 = vector.load %arg3[%c0_3, %c0_4] : memref<2x1xf32, #tpu.memory_space<vmem>>, vector<2x1xf32>
    %4 = vector.broadcast %3 : vector<2x1xf32> to vector<2x8xf32>
    %5 = arith.addf %2, %4 : vector<2x8xf32>
    %6 = math.absf %5 : vector<2x8xf32>
    %cst_5 = arith.constant 0.000000e+00 : f32
    %7 = vector.broadcast %cst_5 : f32 to vector<2x8xf32>
    %8 = arith.subf %7, %6 : vector<2x8xf32>
    %9 = math.exp %8 : vector<2x8xf32>
    %cst_6 = arith.constant 0.000000e+00 : f32
    %10 = vector.broadcast %cst_6 : f32 to vector<2x8xf32>
    %11 = arith.cmpf oge, %5, %10 : vector<2x8xf32>
    %cst_7 = arith.constant 1.000000e+00 : f32
    %12 = vector.broadcast %cst_7 : f32 to vector<2x8xf32>
    %13 = arith.select %11, %12, %9 : vector<2x8xi1>, vector<2x8xf32>
    %cst_8 = arith.constant 1.000000e+00 : f32
    %14 = vector.broadcast %cst_8 : f32 to vector<2x8xf32>
    %15 = arith.addf %14, %9 : vector<2x8xf32>
    %16 = arith.divf %13, %15 : vector<2x8xf32>
    %c0_9 = arith.constant 0 : index
    %c0_10 = arith.constant 0 : index
    %17 = vector.load %arg4[%c0_9, %c0_10] : memref<2x8xf32, #tpu.memory_space<vmem>>, vector<2x8xf32>
    tpu.vector_store %arg4[%c0_9, %c0_10], %16 {strides = array<i32>} : memref<2x8xf32, #tpu.memory_space<vmem>>, vector<2x8xf32>,
    return
  }
  func.func @transform_0(%arg0: i32) -> (i32, i32) {
    %c0_i32 = arith.constant 0 : i32
    %c0_i32_0 = arith.constant 0 : i32
    return %arg0, %c0_i32 : i32, i32
  }
  func.func @transform_1(%arg0: i32) -> (i32, i32) {
    %c0_i32 = arith.constant 0 : i32
    %c0_i32_0 = arith.constant 0 : i32
    %c0_i32_1 = arith.constant 0 : i32
    return %c0_i32, %c0_i32_0 : i32, i32
  }
  func.func @transform_2(%arg0: i32) -> (i32, i32) {
    %c0_i32 = arith.constant 0 : i32
    %c0_i32_0 = arith.constant 0 : i32
    %c0_i32_1 = arith.constant 0 : i32
    return %c0_i32, %c0_i32_0 : i32, i32
  }
  func.func @transform_3(%arg0: i32) -> (i32, i32) {
    %c0_i32 = arith.constant 0 : i32
    %c0_i32_0 = arith.constant 0 : i32
    return %c0_i32, %arg0 : i32, i32
  }
}

</mosaic_0001>

<llo_original>
// kernel: lrnet_forward.1
$region0: #{lrnet_forward.1}
  #allocation0 [shape = 'u32[]', space=smem, size = 0x4, offset = 0x4, fixed_abs, tag = 'smem constant byte address 0x4 - core index']
  #allocation1 [shape = 'u32[144,128]{1,0:T(1,128)}', space=vmem, size = 0x12000, scoped, tag = 'internal scratch']
  %s0 = inlined_call_operand.vmem [shape: f32[8,19], index: 0, kind: input, shape index: {}]
  %s1 = inlined_call_operand.vmem [shape: f32[2,19], index: 1, kind: input, shape index: {}]
  %s2 = inlined_call_operand.vmem [shape: f32[2,1], index: 2, kind: input, shape index: {}]
  %s3 = inlined_call_operand.hbm [shape: f32[2,8], index: 3, kind: output, shape index: {}]
  %s4 = sld [smem:[#allocation0]]
  $region22: #{lrnet_forward.1} parent=0
    _
  %s6 = ssub.s32 1, %s4
  %s7 = scalar_select 0, %s6, %s4
  $region1: #{lrnet_forward.1} parent=0
    #allocation2 [shape = 'u8[1024]{0}', space=vmem, size = 0x400, scoped, tag = 'output window, operand 0, single buffered']
    #allocation3 [shape = 's32[1]{0}', space=sflag, size = 0x4, scoped, tag = 'scoped memory for lrnet_forward.1']
    %8 = vsyncpa [#allocation3], 0
    // Predicated region
    $region2: #{lrnet_forward.1} parent=1 // pred_check
      _
    $region3: #{lrnet_forward.1} parent=1 // pred_check_branch
      %10 = sbr.rel (0) target = $region5
    $region4: #{lrnet_forward.1} parent=1 // pred_region
      _
    $region5: #{lrnet_forward.1} parent=1 // pred_fallthru
      _
    // Predicated region
    $region6: #{lrnet_forward.1} parent=1 // pred_check
      _
    $region7: #{lrnet_forward.1} parent=1 // pred_check_branch
      %12 = sbr.rel (0) target = $region9
    $region8: #{lrnet_forward.1} parent=1 // pred_region
      _
    $region9: #{lrnet_forward.1} parent=1 // pred_fallthru
      _
    // Predicated region
    $region10: #{lrnet_forward.1} parent=1 // pred_check
      _
    $region11: #{lrnet_forward.1} parent=1 // pred_check_branch
      %14 = sbr.rel (0) target = $region13
    $region12: #{lrnet_forward.1} parent=1 // pred_region
      _
    $region13: #{lrnet_forward.1} parent=1 // pred_fallthru
      _
    %v15 = vld [vmem:[%s1] sm:$0x3]
    %v16 = vld [vmem:[%s0] sm:$0xff]
    %v17 = vld [vmem:[%s2] sm:$0x3]
    %19 = vset.pattern.permute.xlu0 0
    %20 = vperm.xlu0 %19, %v17
    %v21 = vpop.permute.xlu0 %20
    %vm23 = vcmask 154624
    %v25 = vsel %vm23, %v15, 0
    %v28 = vsel %vm23, %v16, 0
    %30 = vmatprep.subr.mxu0 0.0
    %v31 = vand.u32 %v28, 4294901760
    %32 = vmatpush1.xpose.msra.mxu0 %v31
    %33 = vmatprep.subr.mxu0 0.0
    %34 = vmatpush1.xpose.msra.mxu0 0.0
    %35 = vmatprep.subr.mxu0 0.0
    %36 = vmatpush1.xpose.msra.mxu0 0.0
    %37 = vmatprep.subr.mxu0 0.0
    %38 = vmatpush1.xpose.msra.mxu0 0.0
    %39 = vmatprep.subr.mxu0 0.0
    %40 = vmatpush1.xpose.msra.mxu0 0.0
    %41 = vmatprep.subr.mxu0 0.0
    %42 = vmatpush1.xpose.msra.mxu0 0.0
    %43 = vmatprep.subr.mxu0 0.0
    %44 = vmatpush1.xpose.msra.mxu0 0.0
    %45 = vmatprep.subr.mxu0 0.0
    %46 = vmatpush1.xpose.msra.mxu0 0.0
    %47 = vmatprep.subr.mxu0 0.0
    %48 = vmatpush1.xpose.msra.mxu0 0.0
    %49 = vmatprep.subr.mxu0 0.0
    %50 = vmatpush1.xpose.msra.mxu0 0.0
    %51 = vmatprep.subr.mxu0 0.0
    %52 = vmatpush1.xpose.msra.mxu0 0.0
    %53 = vmatprep.subr.mxu0 0.0
    %54 = vmatpush1.xpose.msra.mxu0 0.0
    %55 = vmatprep.subr.mxu0 0.0
    %56 = vmatpush1.xpose.msra.mxu0 0.0
    %57 = vmatprep.subr.mxu0 0.0
    %58 = vmatpush1.xpose.msra.mxu0 0.0
    %59 = vmatprep.subr.mxu0 0.0
    %60 = vmatpush1.xpose.msra.mxu0 0.0
    %61 = vmatprep.subr.mxu0 0.0
    %62 = vmatpush1.xpose.msra.mxu0 0.0
    %63 = vmatprep.subr.mxu0 0.0
    %64 = vmatpush1.xpose.msra.mxu0 0.0
    %65 = vmatprep.subr.mxu0 0.0
    %66 = vmatpush1.xpose.msra.mxu0 0.0
    %67 = vmatprep.subr.mxu0 0.0
    %68 = vmatpush1.xpose.msra.mxu0 0.0
    %69 = vmatprep.subr.mxu0 0.0
    %70 = vmatpush1.xpose.msra.mxu0 0.0
    %71 = vmatprep.subr.mxu0 0.0
    %72 = vmatpush1.xpose.msra.mxu0 0.0
    %73 = vmatprep.subr.mxu0 0.0
    %74 = vmatpush1.xpose.msra.mxu0 0.0
    %75 = vmatprep.subr.mxu0 0.0
    %76 = vmatpush1.xpose.msra.mxu0 0.0
    %77 = vmatprep.subr.mxu0 0.0
    %78 = vmatpush1.xpose.msra.mxu0 0.0
    %79 = vmatprep.subr.mxu0 0.0
    %80 = vmatpush1.xpose.msra.mxu0 0.0
    %81 = vmatprep.subr.mxu0 0.0
    %82 = vmatpush1.xpose.msra.mxu0 0.0
    %83 = vmatprep.subr.mxu0 0.0
    %84 = vmatpush1.xpose.msra.mxu0 0.0
    %85 = vmatprep.subr.mxu0 0.0
    %86 = vmatpush1.xpose.msra.mxu0 0.0
    %87 = vmatprep.subr.mxu0 0.0
    %88 = vmatpush1.xpose.msra.mxu0 0.0
    %89 = vmatprep.subr.mxu0 0.0
    %90 = vmatpush1.xpose.msra.mxu0 0.0
    %91 = vmatprep.subr.mxu0 0.0
    %92 = vmatpush1.xpose.msra.mxu0 0.0
    %93 = vmatprep.subr.mxu0 0.0
    %94 = vmatpush1.xpose.msra.mxu0 0.0
    %95 = vmatprep.mubr.f32.mxu0 0.0
    %v96 = vand.u32 %v25, 4294901760
    %v97 = vsub.f32 %v25, %v96
    %v98 = vand.u32 %v97, 4294901760
    %v99 = vsub.f32 %v97, %v98
    %v100 = vand.u32 %v99, 4294901760
    %101 = vmatmul.mubr.f32.gmra.mrb[0].mxu0 %v100
    %v102 = vpop.f32.mrb[0].mxu0
    %v103 = vadd.f32 %v21, %v102
    %v104 = vpop.f32.mrb[0].mxu0
    %105 = vdwg.mxu0
    %106 = vmatprep.subr.mxu0 0.0
    %v107 = vand.u32 %v28, 4294901760
    %v108 = vsub.f32 %v28, %v107
    %v109 = vand.u32 %v108, 4294901760
    %v110 = vsub.f32 %v108, %v109
    %v111 = vand.u32 %v110, 4294901760
    %112 = vmatpush1.xpose.msra.mxu0 %v111
    %113 = vmatprep.subr.mxu0 0.0
    %114 = vmatpush1.xpose.msra.mxu0 0.0
    %115 = vmatprep.subr.mxu0 0.0
    %116 = vmatpush1.xpose.msra.mxu0 0.0
    %117 = vmatprep.subr.mxu0 0.0
    %118 = vmatpush1.xpose.msra.mxu0 0.0
    %119 = vmatprep.subr.mxu0 0.0
    %120 = vmatpush1.xpose.msra.mxu0 0.0
    %121 = vmatprep.subr.mxu0 0.0
    %122 = vmatpush1.xpose.msra.mxu0 0.0
    %123 = vmatprep.subr.mxu0 0.0
    %124 = vmatpush1.xpose.msra.mxu0 0.0
    %125 = vmatprep.subr.mxu0 0.0
    %126 = vmatpush1.xpose.msra.mxu0 0.0
    %127 = vmatprep.subr.mxu0 0.0
    %128 = vmatpush1.xpose.msra.mxu0 0.0
    %129 = vmatprep.subr.mxu0 0.0
    %130 = vmatpush1.xpose.msra.mxu0 0.0
    %131 = vmatprep.subr.mxu0 0.0
    %132 = vmatpush1.xpose.msra.mxu0 0.0
    %133 = vmatprep.subr.mxu0 0.0
    %134 = vmatpush1.xpose.msra.mxu0 0.0
    %135 = vmatprep.subr.mxu0 0.0
    %136 = vmatpush1.xpose.msra.mxu0 0.0
    %137 = vmatprep.subr.mxu0 0.0
    %138 = vmatpush1.xpose.msra.mxu0 0.0
    %139 = vmatprep.subr.mxu0 0.0
    %140 = vmatpush1.xpose.msra.mxu0 0.0
    %141 = vmatprep.subr.mxu0 0.0
    %142 = vmatpush1.xpose.msra.mxu0 0.0
    %143 = vmatprep.subr.mxu0 0.0
    %144 = vmatpush1.xpose.msra.mxu0 0.0
    %145 = vmatprep.subr.mxu0 0.0
    %146 = vmatpush1.xpose.msra.mxu0 0.0
    %147 = vmatprep.subr.mxu0 0.0
    %148 = vmatpush1.xpose.msra.mxu0 0.0
    %149 = vmatprep.subr.mxu0 0.0
    %150 = vmatpush1.xpose.msra.mxu0 0.0
    %151 = vmatprep.subr.mxu0 0.0
    %152 = vmatpush1.xpose.msra.mxu0 0.0
    %153 = vmatprep.subr.mxu0 0.0
    %154 = vmatpush1.xpose.msra.mxu0 0.0
    %155 = vmatprep.subr.mxu0 0.0
    %156 = vmatpush1.xpose.msra.mxu0 0.0
    %157 = vmatprep.subr.mxu0 0.0
    %158 = vmatpush1.xpose.msra.mxu0 0.0
    %159 = vmatprep.subr.mxu0 0.0
    %160 = vmatpush1.xpose.msra.mxu0 0.0
    %161 = vmatprep.subr.mxu0 0.0
    %162 = vmatpush1.xpose.msra.mxu0 0.0
    %163 = vmatprep.subr.mxu0 0.0
    %164 = vmatpush1.xpose.msra.mxu0 0.0
    %165 = vmatprep.subr.mxu0 0.0
    %166 = vmatpush1.xpose.msra.mxu0 0.0
    %167 = vmatprep.subr.mxu0 0.0
    %168 = vmatpush1.xpose.msra.mxu0 0.0
    %169 = vmatprep.subr.mxu0 0.0
    %170 = vmatpush1.xpose.msra.mxu0 0.0
    %171 = vmatprep.subr.mxu0 0.0
    %172 = vmatpush1.xpose.msra.mxu0 0.0
    %173 = vmatprep.subr.mxu0 0.0
    %174 = vmatpush1.xpose.msra.mxu0 0.0
    %175 = vmatprep.mubr.f32.mxu0 0.0
    %v176 = vand.u32 %v25, 4294901760
    %177 = vmatmul.mubr.f32.gmra.mrb[0].mxu0 %v176
    %v178 = vpop.f32.mrb[0].mxu0
    %v179 = vadd.f32 %v103, %v178
    %v180 = vpop.f32.mrb[0].mxu0
    %181 = vdwg.mxu0
    %182 = vmatprep.subr.mxu0 0.0
    %v183 = vand.u32 %v28, 4294901760
    %v184 = vsub.f32 %v28, %v183
    %185 = vmatpush1.xpose.msra.mxu0 %v184
    %186 = vmatprep.subr.mxu0 0.0
    %187 = vmatpush1.xpose.msra.mxu0 0.0
    %188 = vmatprep.subr.mxu0 0.0
    %189 = vmatpush1.xpose.msra.mxu0 0.0
    %190 = vmatprep.subr.mxu0 0.0
    %191 = vmatpush1.xpose.msra.mxu0 0.0
    %192 = vmatprep.subr.mxu0 0.0
    %193 = vmatpush1.xpose.msra.mxu0 0.0
    %194 = vmatprep.subr.mxu0 0.0
    %195 = vmatpush1.xpose.msra.mxu0 0.0
    %196 = vmatprep.subr.mxu0 0.0
    %197 = vmatpush1.xpose.msra.mxu0 0.0
    %198 = vmatprep.subr.mxu0 0.0
    %199 = vmatpush1.xpose.msra.mxu0 0.0
    %200 = vmatprep.subr.mxu0 0.0
    %201 = vmatpush1.xpose.msra.mxu0 0.0
    %202 = vmatprep.subr.mxu0 0.0
    %203 = vmatpush1.xpose.msra.mxu0 0.0
    %204 = vmatprep.subr.mxu0 0.0
    %205 = vmatpush1.xpose.msra.mxu0 0.0
    %206 = vmatprep.subr.mxu0 0.0
    %207 = vmatpush1.xpose.msra.mxu0 0.0
    %208 = vmatprep.subr.mxu0 0.0
    %209 = vmatpush1.xpose.msra.mxu0 0.0
    %210 = vmatprep.subr.mxu0 0.0
    %211 = vmatpush1.xpose.msra.mxu0 0.0
    %212 = vmatprep.subr.mxu0 0.0
    %213 = vmatpush1.xpose.msra.mxu0 0.0
    %214 = vmatprep.subr.mxu0 0.0
    %215 = vmatpush1.xpose.msra.mxu0 0.0
    %216 = vmatprep.subr.mxu0 0.0
    %217 = vmatpush1.xpose.msra.mxu0 0.0
    %218 = vmatprep.subr.mxu0 0.0
    %219 = vmatpush1.xpose.msra.mxu0 0.0
    %220 = vmatprep.subr.mxu0 0.0
    %221 = vmatpush1.xpose.msra.mxu0 0.0
    %222 = vmatprep.subr.mxu0 0.0
    %223 = vmatpush1.xpose.msra.mxu0 0.0
    %224 = vmatprep.subr.mxu0 0.0
    %225 = vmatpush1.xpose.msra.mxu0 0.0
    %226 = vmatprep.subr.mxu0 0.0
    %227 = vmatpush1.xpose.msra.mxu0 0.0
    %228 = vmatprep.subr.mxu0 0.0
    %229 = vmatpush1.xpose.msra.mxu0 0.0
    %230 = vmatprep.subr.mxu0 0.0
    %231 = vmatpush1.xpose.msra.mxu0 0.0
    %232 = vmatprep.subr.mxu0 0.0
    %233 = vmatpush1.xpose.msra.mxu0 0.0
    %234 = vmatprep.subr.mxu0 0.0
    %235 = vmatpush1.xpose.msra.mxu0 0.0
    %236 = vmatprep.subr.mxu0 0.0
    %237 = vmatpush1.xpose.msra.mxu0 0.0
    %238 = vmatprep.subr.mxu0 0.0
    %239 = vmatpush1.xpose.msra.mxu0 0.0
    %240 = vmatprep.subr.mxu0 0.0
    %241 = vmatpush1.xpose.msra.mxu0 0.0
    %242 = vmatprep.subr.mxu0 0.0
    %243 = vmatpush1.xpose.msra.mxu0 0.0
    %244 = vmatprep.subr.mxu0 0.0
    %245 = vmatpush1.xpose.msra.mxu0 0.0
    %246 = vmatprep.subr.mxu0 0.0
    %247 = vmatpush1.xpose.msra.mxu0 0.0
    %248 = vmatprep.mubr.f32.mxu0 0.0
    %v249 = vand.u32 %v25, 4294901760
    %v250 = vsub.f32 %v25, %v249
    %251 = vmatmul.mubr.f32.gmra.mrb[0].mxu0 %v250
    %v252 = vpop.f32.mrb[0].mxu0
    %v253 = vadd.f32 %v179, %v252
    %v254 = vpop.f32.mrb[0].mxu0
    %255 = vdwg.mxu0
    %256 = vmatprep.subr.mxu0 0.0
    %v257 = vand.u32 %v28, 4294901760
    %258 = vmatpush1.xpose.msra.mxu0 %v257
    %259 = vmatprep.subr.mxu0 0.0
    %260 = vmatpush1.xpose.msra.mxu0 0.0
    %261 = vmatprep.subr.mxu0 0.0
    %262 = vmatpush1.xpose.msra.mxu0 0.0
    %263 = vmatprep.subr.mxu0 0.0
    %264 = vmatpush1.xpose.msra.mxu0 0.0
    %265 = vmatprep.subr.mxu0 0.0
    %266 = vmatpush1.xpose.msra.mxu0 0.0
    %267 = vmatprep.subr.mxu0 0.0
    %268 = vmatpush1.xpose.msra.mxu0 0.0
    %269 = vmatprep.subr.mxu0 0.0
    %270 = vmatpush1.xpose.msra.mxu0 0.0
    %271 = vmatprep.subr.mxu0 0.0
    %272 = vmatpush1.xpose.msra.mxu0 0.0
    %273 = vmatprep.subr.mxu0 0.0
    %274 = vmatpush1.xpose.msra.mxu0 0.0
    %275 = vmatprep.subr.mxu0 0.0
    %276 = vmatpush1.xpose.msra.mxu0 0.0
    %277 = vmatprep.subr.mxu0 0.0
    %278 = vmatpush1.xpose.msra.mxu0 0.0
    %279 = vmatprep.subr.mxu0 0.0
    %280 = vmatpush1.xpose.msra.mxu0 0.0
    %281 = vmatprep.subr.mxu0 0.0
    %282 = vmatpush1.xpose.msra.mxu0 0.0
    %283 = vmatprep.subr.mxu0 0.0
    %284 = vmatpush1.xpose.msra.mxu0 0.0
    %285 = vmatprep.subr.mxu0 0.0
    %286 = vmatpush1.xpose.msra.mxu0 0.0
    %287 = vmatprep.subr.mxu0 0.0
    %288 = vmatpush1.xpose.msra.mxu0 0.0
    %289 = vmatprep.subr.mxu0 0.0
    %290 = vmatpush1.xpose.msra.mxu0 0.0
    %291 = vmatprep.subr.mxu0 0.0
    %292 = vmatpush1.xpose.msra.mxu0 0.0
    %293 = vmatprep.subr.mxu0 0.0
    %294 = vmatpush1.xpose.msra.mxu0 0.0
    %295 = vmatprep.subr.mxu0 0.0
    %296 = vmatpush1.xpose.msra.mxu0 0.0
    %297 = vmatprep.subr.mxu0 0.0
    %298 = vmatpush1.xpose.msra.mxu0 0.0
    %299 = vmatprep.subr.mxu0 0.0
    %300 = vmatpush1.xpose.msra.mxu0 0.0
    %301 = vmatprep.subr.mxu0 0.0
    %302 = vmatpush1.xpose.msra.mxu0 0.0
    %303 = vmatprep.subr.mxu0 0.0
    %304 = vmatpush1.xpose.msra.mxu0 0.0
    %305 = vmatprep.subr.mxu0 0.0
    %306 = vmatpush1.xpose.msra.mxu0 0.0
    %307 = vmatprep.subr.mxu0 0.0
    %308 = vmatpush1.xpose.msra.mxu0 0.0
    %309 = vmatprep.subr.mxu0 0.0
    %310 = vmatpush1.xpose.msra.mxu0 0.0
    %311 = vmatprep.subr.mxu0 0.0
    %312 = vmatpush1.xpose.msra.mxu0 0.0
    %313 = vmatprep.subr.mxu0 0.0
    %314 = vmatpush1.xpose.msra.mxu0 0.0
    %315 = vmatprep.subr.mxu0 0.0
    %316 = vmatpush1.xpose.msra.mxu0 0.0
    %317 = vmatprep.subr.mxu0 0.0
    %318 = vmatpush1.xpose.msra.mxu0 0.0
    %319 = vmatprep.subr.mxu0 0.0
    %320 = vmatpush1.xpose.msra.mxu0 0.0
    %321 = vmatprep.mubr.f32.mxu0 0.0
    %v322 = vand.u32 %v25, 4294901760
    %v323 = vsub.f32 %v25, %v322
    %v324 = vand.u32 %v323, 4294901760
    %325 = vmatmul.mubr.f32.gmra.mrb[0].mxu0 %v324
    %v326 = vpop.f32.mrb[0].mxu0
    %v327 = vadd.f32 %v253, %v326
    %v328 = vpop.f32.mrb[0].mxu0
    %329 = vdwg.mxu0
    %330 = vmatprep.subr.mxu0 0.0
    %v331 = vand.u32 %v28, 4294901760
    %v332 = vsub.f32 %v28, %v331
    %v333 = vand.u32 %v332, 4294901760
    %334 = vmatpush1.xpose.msra.mxu0 %v333
    %335 = vmatprep.subr.mxu0 0.0
    %336 = vmatpush1.xpose.msra.mxu0 0.0
    %337 = vmatprep.subr.mxu0 0.0
    %338 = vmatpush1.xpose.msra.mxu0 0.0
    %339 = vmatprep.subr.mxu0 0.0
    %340 = vmatpush1.xpose.msra.mxu0 0.0
    %341 = vmatprep.subr.mxu0 0.0
    %342 = vmatpush1.xpose.msra.mxu0 0.0
    %343 = vmatprep.subr.mxu0 0.0
    %344 = vmatpush1.xpose.msra.mxu0 0.0
    %345 = vmatprep.subr.mxu0 0.0
    %346 = vmatpush1.xpose.msra.mxu0 0.0
    %347 = vmatprep.subr.mxu0 0.0
    %348 = vmatpush1.xpose.msra.mxu0 0.0
    %349 = vmatprep.subr.mxu0 0.0
    %350 = vmatpush1.xpose.msra.mxu0 0.0
    %351 = vmatprep.subr.mxu0 0.0
    %352 = vmatpush1.xpose.msra.mxu0 0.0
    %353 = vmatprep.subr.mxu0 0.0
    %354 = vmatpush1.xpose.msra.mxu0 0.0
    %355 = vmatprep.subr.mxu0 0.0
    %356 = vmatpush1.xpose.msra.mxu0 0.0
    %357 = vmatprep.subr.mxu0 0.0
    %358 = vmatpush1.xpose.msra.mxu0 0.0
    %359 = vmatprep.subr.mxu0 0.0
    %360 = vmatpush1.xpose.msra.mxu0 0.0
    %361 = vmatprep.subr.mxu0 0.0
    %362 = vmatpush1.xpose.msra.mxu0 0.0
    %363 = vmatprep.subr.mxu0 0.0
    %364 = vmatpush1.xpose.msra.mxu0 0.0
    %365 = vmatprep.subr.mxu0 0.0
    %366 = vmatpush1.xpose.msra.mxu0 0.0
    %367 = vmatprep.subr.mxu0 0.0
    %368 = vmatpush1.xpose.msra.mxu0 0.0
    %369 = vmatprep.subr.mxu0 0.0
    %370 = vmatpush1.xpose.msra.mxu0 0.0
    %371 = vmatprep.subr.mxu0 0.0
    %372 = vmatpush1.xpose.msra.mxu0 0.0
    %373 = vmatprep.subr.mxu0 0.0
    %374 = vmatpush1.xpose.msra.mxu0 0.0
    %375 = vmatprep.subr.mxu0 0.0
    %376 = vmatpush1.xpose.msra.mxu0 0.0
    %377 = vmatprep.subr.mxu0 0.0
    %378 = vmatpush1.xpose.msra.mxu0 0.0
    %379 = vmatprep.subr.mxu0 0.0
    %380 = vmatpush1.xpose.msra.mxu0 0.0
    %381 = vmatprep.subr.mxu0 0.0
    %382 = vmatpush1.xpose.msra.mxu0 0.0
    %383 = vmatprep.subr.mxu0 0.0
    %384 = vmatpush1.xpose.msra.mxu0 0.0
    %385 = vmatprep.subr.mxu0 0.0
    %386 = vmatpush1.xpose.msra.mxu0 0.0
    %387 = vmatprep.subr.mxu0 0.0
    %388 = vmatpush1.xpose.msra.mxu0 0.0
    %389 = vmatprep.subr.mxu0 0.0
    %390 = vmatpush1.xpose.msra.mxu0 0.0
    %391 = vmatprep.subr.mxu0 0.0
    %392 = vmatpush1.xpose.msra.mxu0 0.0
    %393 = vmatprep.subr.mxu0 0.0
    %394 = vmatpush1.xpose.msra.mxu0 0.0
    %395 = vmatprep.subr.mxu0 0.0
    %396 = vmatpush1.xpose.msra.mxu0 0.0
    %397 = vmatprep.mubr.f32.mxu0 0.0
    %v398 = vand.u32 %v25, 4294901760
    %399 = vmatmul.mubr.f32.gmra.mrb[0].mxu0 %v398
    %v400 = vpop.f32.mrb[0].mxu0
    %v401 = vadd.f32 %v327, %v400
    %v402 = vpop.f32.mrb[0].mxu0
    %403 = vdwg.mxu0
    %404 = vmatprep.subr.mxu0 0.0
    %v405 = vand.u32 %v28, 4294901760
    %406 = vmatpush1.xpose.msra.mxu0 %v405
    %407 = vmatprep.subr.mxu0 0.0
    %408 = vmatpush1.xpose.msra.mxu0 0.0
    %409 = vmatprep.subr.mxu0 0.0
    %410 = vmatpush1.xpose.msra.mxu0 0.0
    %411 = vmatprep.subr.mxu0 0.0
    %412 = vmatpush1.xpose.msra.mxu0 0.0
    %413 = vmatprep.subr.mxu0 0.0
    %414 = vmatpush1.xpose.msra.mxu0 0.0
    %415 = vmatprep.subr.mxu0 0.0
    %416 = vmatpush1.xpose.msra.mxu0 0.0
    %417 = vmatprep.subr.mxu0 0.0
    %418 = vmatpush1.xpose.msra.mxu0 0.0
    %419 = vmatprep.subr.mxu0 0.0
    %420 = vmatpush1.xpose.msra.mxu0 0.0
    %421 = vmatprep.subr.mxu0 0.0
    %422 = vmatpush1.xpose.msra.mxu0 0.0
    %423 = vmatprep.subr.mxu0 0.0
    %424 = vmatpush1.xpose.msra.mxu0 0.0
    %425 = vmatprep.subr.mxu0 0.0
    %426 = vmatpush1.xpose.msra.mxu0 0.0
    %427 = vmatprep.subr.mxu0 0.0
    %428 = vmatpush1.xpose.msra.mxu0 0.0
    %429 = vmatprep.subr.mxu0 0.0
    %430 = vmatpush1.xpose.msra.mxu0 0.0
    %431 = vmatprep.subr.mxu0 0.0
    %432 = vmatpush1.xpose.msra.mxu0 0.0
    %433 = vmatprep.subr.mxu0 0.0
    %434 = vmatpush1.xpose.msra.mxu0 0.0
    %435 = vmatprep.subr.mxu0 0.0
    %436 = vmatpush1.xpose.msra.mxu0 0.0
    %437 = vmatprep.subr.mxu0 0.0
    %438 = vmatpush1.xpose.msra.mxu0 0.0
    %439 = vmatprep.subr.mxu0 0.0
    %440 = vmatpush1.xpose.msra.mxu0 0.0
    %441 = vmatprep.subr.mxu0 0.0
    %442 = vmatpush1.xpose.msra.mxu0 0.0
    %443 = vmatprep.subr.mxu0 0.0
    %444 = vmatpush1.xpose.msra.mxu0 0.0
    %445 = vmatprep.subr.mxu0 0.0
    %446 = vmatpush1.xpose.msra.mxu0 0.0
    %447 = vmatprep.subr.mxu0 0.0
    %448 = vmatpush1.xpose.msra.mxu0 0.0
    %449 = vmatprep.subr.mxu0 0.0
    %450 = vmatpush1.xpose.msra.mxu0 0.0
    %451 = vmatprep.subr.mxu0 0.0
    %452 = vmatpush1.xpose.msra.mxu0 0.0
    %453 = vmatprep.subr.mxu0 0.0
    %454 = vmatpush1.xpose.msra.mxu0 0.0
    %455 = vmatprep.subr.mxu0 0.0
    %456 = vmatpush1.xpose.msra.mxu0 0.0
    %457 = vmatprep.subr.mxu0 0.0
    %458 = vmatpush1.xpose.msra.mxu0 0.0
    %459 = vmatprep.subr.mxu0 0.0
    %460 = vmatpush1.xpose.msra.mxu0 0.0
    %461 = vmatprep.subr.mxu0 0.0
    %462 = vmatpush1.xpose.msra.mxu0 0.0
    %463 = vmatprep.subr.mxu0 0.0
    %464 = vmatpush1.xpose.msra.mxu0 0.0
    %465 = vmatprep.subr.mxu0 0.0
    %466 = vmatpush1.xpose.msra.mxu0 0.0
    %467 = vmatprep.subr.mxu0 0.0
    %468 = vmatpush1.xpose.msra.mxu0 0.0
    %469 = vmatprep.mubr.f32.mxu0 0.0
    %v470 = vand.u32 %v25, 4294901760
    %471 = vmatmul.mubr.f32.gmra.mrb[0].mxu0 %v470
    %v472 = vpop.f32.mrb[0].mxu0
    %v473 = vadd.f32 %v401, %v472
    %v474 = vpop.f32.mrb[0].mxu0
    %475 = vdwg.mxu0
    %v476 = vand.u32 2147483647, %v473
    %v477 = vsub.f32 0.0, %v476
    %v478 = vmul.f32 %v477, 1.442695
    %v479 = vpow.pop %v478
    %vm480 = vcmp.ge.f32.partialorder %v473, 0.0
    %v481 = vsel %vm480, 1.0, %v479
    %v482 = vadd.f32 %v479, 1.0
    %v483 = vrcp.pop %v482
    %v484 = vmul.f32 %v481, %v483
    %vm485 = vcmask 58368
    %486 = vst.msk [vmem:[#allocation2] sm:$0x3] %vm485, %v484
    // Predicated region
    $region14: #{lrnet_forward.1} parent=1 // pred_check
      _
    $region15: #{lrnet_forward.1} parent=1 // pred_check_branch
      %488 = sbr.rel (0) target = $region17
    $region16: #{lrnet_forward.1} parent=1 // pred_region
      %s490 = ssub.s32 32, 32
      %491 = vsyncadd [#allocation3], %s490
      %s493 = sshll.u32 [#allocation2], 4
      %s494 = int_to_ptr.vmem [resolvable:$true] %s493
      %496 = dma.vmem_to_hbm [thread:$0]  %s494, 32, %s3, [#allocation3]
    $region17: #{lrnet_forward.1} parent=1 // pred_fallthru
      _
    // Predicated region
    $region18: #{lrnet_forward.1} parent=1 // pred_check
      _
    $region19: #{lrnet_forward.1} parent=1 // pred_check_branch
      %498 = sbr.rel (0) target = $region21
    $region20: #{lrnet_forward.1} parent=1 // pred_region
      %499 = dma.done [#allocation3], 32
    $region21: #{lrnet_forward.1} parent=1 // pred_fallthru
      _
    %500 = vsyncpa [#allocation3], 1

</llo_original>
